<compile_context>
chip_gen: v7x
topology: tpu7x:2x2x1
jax: 0.10.0
libtpu: 0.0.40
codegen_flags: <defaults>
</compile_context>

<pallas_src>
import math
import jax
import jax.numpy as jnp
from jax.experimental import pallas as pl
from jax.experimental.pallas import tpu as pltpu


def _cdiv(a, b):
    return -(-a // b)


def _round_down_to(x, m):
    return (x // m) * m


def _make_encoder_kernel(tl, multi):
    """out(C, tl) = ReLU(W_top @ xrT[:, l] + W_bot @ xrT[:, l+1] + b) for one grid cell."""

    def kernel(*refs):
        if multi:
            xm_ref, xh_ref, wt_ref, wb_ref, b_ref, o_ref = refs
        else:
            xm_ref, wt_ref, wb_ref, b_ref, o_ref = refs
        # Upcast the (possibly bf16) signal stream once; all arithmetic below is f32.
        v = xm_ref[0, :, :].astype(jnp.float32)                 # (hop, tl) / (hop, W)
        if multi:
            # 128-column halo block from the next tile (same HBM buffer, tiny re-read);
            # only its first column is actually consumed by the offset-1 slice below.
            v = jnp.concatenate([v, xh_ref[0, :, :].astype(jnp.float32)], axis=1)
        top = v[:, :tl]                                          # xrT[:, l]      (hop, tl)
        bot = v[:, 1:tl + 1]                                     # xrT[:, l + 1]  (hop, tl)
        acc = jnp.dot(wt_ref[...], top, preferred_element_type=jnp.float32)   # (C, tl)
        acc = acc + jnp.dot(wb_ref[...], bot, preferred_element_type=jnp.float32)
        acc = acc + b_ref[...]                                   # (C, 1) broadcast over lanes
        o_ref[0, :, :] = jnp.maximum(acc, 0.0).astype(o_ref.dtype)   # ReLU, lane-dense store

    return kernel


def _pick_tile(L, B, C, hop, in_bytes, out_bytes, tile_l, vmem_budget_bytes):
    """Largest 128-multiple L tile that (a) fits the VMEM budget (incl. double buffers
    and f32 temporaries) and (b) leaves >= ~8 grid steps for megacore / pipeline ramp."""

    def est(t):
        return (2 * hop * (t + 128) * in_bytes      # main + halo input blocks, double-buffered
                + 2 * C * t * out_bytes             # output blocks, double-buffered
                + hop * (t + 128) * 4               # f32 upcast of the signal block
                + 2 * hop * t * 4                   # top / bot temporaries
                + 2 * C * t * 4)                    # f32 matmul accumulator temporaries

    tl = max(128, _round_down_to(min(tile_l, L), 128))
    while tl > 128 and est(tl) > vmem_budget_bytes:           # v7x: 64 MiB phys VMEM
        tl = max(128, _round_down_to(tl // 2, 128))
    while tl > 128 and B * _cdiv(L, tl) < 8:                  # keep both TCs busy
        tl = max(128, _round_down_to(tl // 2, 128))
    if tl >= L:
        tl = L
    return tl, est(max(tl, 128))


def encoder_forward(x, weight, bias, kernel_size, *, tile_l=16384,
                    compute_dtype=jnp.bfloat16, out_dtype=jnp.float32,
                    vmem_budget_bytes=24 * 1024 * 1024):
    """x: (B, 1, T) f32, weight: (C, 1, K), bias: (C,)  ->  (B, C, L) out_dtype.

    compute_dtype is the HBM dtype of the signal stream only (default bf16 for
    bandwidth; accumulation, bias, ReLU and weights stay f32).  Use
    compute_dtype=jnp.float32 for exact PyTorch-f32 semantics."""
    assert kernel_size % 2 == 0, "fast path assumes even kernel_size (stride = K//2)"
    hop = kernel_size // 2
    B, in_ch, T = x.shape
    assert in_ch == 1 and T >= kernel_size
    C = weight.shape[0]
    L = (T - kernel_size) // hop + 1
    nr = L + 1                                    # hop-rows touched by the L frames

    in_bytes = jnp.dtype(compute_dtype).itemsize
    out_bytes = jnp.dtype(out_dtype).itemsize
    tl, vmem_est = _pick_tile(L, B, C, hop, in_bytes, out_bytes, tile_l, vmem_budget_bytes)
    nblocks = _cdiv(L, tl)
    multi = nblocks > 1

    # --- single cheap pre-pass: hop-row-major, lane-dense signal layout -------------
    # xrT[b, k, l] = x[b, 0, l*hop + k]   (no im2col duplication, no gather)
    xr = x[:, 0, :nr * hop].reshape(B, nr, hop)                 # (B, nr, hop)
    xrT = jnp.swapaxes(xr, 1, 2).astype(compute_dtype)          # (B, hop, nr)
    if multi:
        W = nblocks * tl + 128                                  # room for the last halo block
    else:
        W = _cdiv(L + 1, 128) * 128                             # room for the +1 column
    xw = jnp.pad(xrT, ((0, 0), (0, 0), (0, W - nr)))            # (B, hop, W)

    wt = weight[:, 0, :hop].astype(jnp.float32)                 # (C, hop) - rows [0:hop]
    wb = weight[:, 0, hop:].astype(jnp.float32)                 # (C, hop) - rows [hop:K]
    b2 = bias.astype(jnp.float32).reshape(C, 1)                 # (C, 1)

    in_specs = [pl.BlockSpec((1, hop, tl if multi else W), lambda b, i: (b, 0, i))]
    operands = [xw]
    if multi:
        hb = tl // 128
        # Halo: 128-column block starting at the NEXT tile, on the SAME buffer.
        in_specs.append(pl.BlockSpec((1, hop, 128), lambda b, i: (b, 0, (i + 1) * hb)))
        operands.append(xw)
    in_specs += [pl.BlockSpec((C, hop), lambda b, i: (0, 0)),   # W_top (resident)
                 pl.BlockSpec((C, hop), lambda b, i: (0, 0)),   # W_bot (resident)
                 pl.BlockSpec((C, 1), lambda b, i: (0, 0))]     # bias  (resident)
    operands += [wt, wb, b2]

    vmem_limit = int(min(56 * 2 ** 20, max(32 * 2 ** 20, 2 * vmem_est)))

    return pl.pallas_call(
        _make_encoder_kernel(tl, multi),
        out_shape=jax.ShapeDtypeStruct((B, C, L), out_dtype),
        grid_spec=pltpu.PrefetchScalarGridSpec(
            num_scalar_prefetch=0,
            grid=(B, nblocks),
            in_specs=in_specs,
            out_specs=pl.BlockSpec((1, C, tl), lambda b, i: (b, 0, i)),
        ),
        compiler_params=pltpu.CompilerParams(
            dimension_semantics=("parallel", "parallel"),
            vmem_limit_bytes=vmem_limit),
    )(*operands)


def reference_forward(x, weight, bias, kernel_size):
    """Pure-JAX reference (matches PyTorch Conv1d + ReLU semantics)."""
    hop = kernel_size // 2
    B, _, T = x.shape
    L = (T - kernel_size) // hop + 1
    idx = hop * jnp.arange(L)[:, None] + jnp.arange(kernel_size)[None, :]
    frames = x[:, 0, :][:, idx]                                   # (B, L, K)
    y = jnp.einsum("blk,ck->bcl", frames, weight[:, 0, :],
                   precision=jax.lax.Precision.HIGHEST) + bias[None, :, None]
    return jnp.maximum(y, 0.0)


if __name__ == "__main__":
    out_channels = 32
    kernel_size = 16
    stride = kernel_size // 2

    key = jax.random.PRNGKey(0)
    kx, kw, kb = jax.random.split(key, 3)

    # PyTorch Conv1d default init: U(-1/sqrt(fan_in), +1/sqrt(fan_in))
    fan_in = 1 * kernel_size
    bound = 1.0 / math.sqrt(fan_in)
    weight = jax.random.uniform(kw, (out_channels, 1, kernel_size),
                                minval=-bound, maxval=bound, dtype=jnp.float32)
    bias = jax.random.uniform(kb, (out_channels,),
                              minval=-bound, maxval=bound, dtype=jnp.float32)

    # --- 1) exact-f32 path, single L block (small smoke test) ---
    B, T = 2, 256
    x = jax.random.normal(kx, (B, 1, T), dtype=jnp.float32)
    L = (T - kernel_size) // stride + 1
    y = jax.block_until_ready(
        encoder_forward(x, weight, bias, kernel_size, compute_dtype=jnp.float32))
    y_ref = reference_forward(x, weight, bias, kernel_size)
    assert y.shape == (B, out_channels, L), y.shape
    assert jnp.allclose(y, y_ref, atol=1e-4, rtol=1e-4), "f32 mismatch vs reference"

    # --- 2) exact-f32 path, several L tiles incl. a partial edge tile (halo columns) ---
    B2, T2 = 2, 4100                   # L2 = 511 -> 4 tiles of 128 (last one partial)
    x2 = jax.random.normal(jax.random.PRNGKey(1), (B2, 1, T2), dtype=jnp.float32)
    L2 = (T2 - kernel_size) // stride + 1
    y2 = jax.block_until_ready(
        encoder_forward(x2, weight, bias, kernel_size, tile_l=128,
                        compute_dtype=jnp.float32))
    y2_ref = reference_forward(x2, weight, bias, kernel_size)
    assert y2.shape == (B2, out_channels, L2), y2.shape
    assert jnp.allclose(y2, y2_ref, atol=1e-4, rtol=1e-4), "tiled f32 mismatch"

    # --- 3) default bf16-signal path, L an exact multiple of the tile
    #        (exercises the halo column that lands exactly at column L) ---
    B3, T3 = 2, 4104                   # L3 = 512 -> 4 full tiles of 128
    x3 = jax.random.normal(jax.random.PRNGKey(2), (B3, 1, T3), dtype=jnp.float32)
    L3 = (T3 - kernel_size) // stride + 1
    y3 = jax.block_until_ready(
        encoder_forward(x3, weight, bias, kernel_size, tile_l=128))
    y3_ref = reference_forward(x3.astype(jnp.bfloat16).astype(jnp.float32),
                               weight, bias, kernel_size)
    assert y3.shape == (B3, out_channels, L3), y3.shape
    assert jnp.allclose(y3, y3_ref, atol=1e-3, rtol=1e-3), "bf16 mismatch"

    print("KERNEL_OK")
</pallas_src>

<mosaic_0001>
module attributes {stable_mosaic.version = 11 : i64} {
  func.func @kernel(%arg0: i32, %arg1: i32, %arg2: memref<1x8x128xf32, #tpu.memory_space<vmem>>, %arg3: memref<32x8xf32, #tpu.memory_space<vmem>>, %arg4: memref<32x8xf32, #tpu.memory_space<vmem>>, %arg5: memref<32x1xf32, #tpu.memory_space<vmem>>, %arg6: memref<1x32x31xf32, #tpu.memory_space<vmem>>) attributes {dimension_semantics = [#tpu.dimension_semantics<parallel>, #tpu.dimension_semantics<parallel>], iteration_bounds = array<i64: 2, 1>, scalar_prefetch = 0 : i64, scratch_operands = 0 : i64, tpu.core_type = #tpu.core_type<tc>, window_params = [{transform_indices = @transform_0, window_bounds = array<i64: 1, 8, 128>}, {pipeline_mode = #tpu.pipeline_mode<synchronous>, transform_indices = @transform_1, window_bounds = array<i64: 32, 8>}, {pipeline_mode = #tpu.pipeline_mode<synchronous>, transform_indices = @transform_2, window_bounds = array<i64: 32, 8>}, {pipeline_mode = #tpu.pipeline_mode<synchronous>, transform_indices = @transform_3, window_bounds = array<i64: 32, 1>}, {transform_indices = @transform_4, window_bounds = array<i64: 1, 32, 31>}]} {
    %c0 = arith.constant 0 : index
    %c0_0 = arith.constant 0 : index
    %c0_1 = arith.constant 0 : index
    %0 = vector.load %arg2[%c0, %c0_0, %c0_1] : memref<1x8x128xf32, #tpu.memory_space<vmem>>, vector<1x8x128xf32>
    %1 = vector.shape_cast %0 : vector<1x8x128xf32> to vector<8x128xf32>
    %2 = vector.extract_strided_slice %1 {offsets = [0, 0], sizes = [8, 31], strides = [1, 1]} : vector<8x128xf32> to vector<8x31xf32>
    %3 = vector.extract_strided_slice %1 {offsets = [0, 1], sizes = [8, 31], strides = [1, 1]} : vector<8x128xf32> to vector<8x31xf32>
    %c0_2 = arith.constant 0 : index
    %c0_3 = arith.constant 0 : index
    %4 = vector.load %arg3[%c0_2, %c0_3] : memref<32x8xf32, #tpu.memory_space<vmem>>, vector<32x8xf32>
    %cst = arith.constant dense<0.000000e+00> : vector<32x31xf32>
    %5 = tpu.matmul %4, %2, %cst {dimension_numbers = #tpu.dot_dimension_numbers<[1], [0], [0], [1], [0, 0, 1, 1], [], []>} : vector<32x8xf32>, vector<8x31xf32>, vector<32x31xf32> -> vector<32x31xf32>
    %c0_4 = arith.constant 0 : index
    %c0_5 = arith.constant 0 : index
    %6 = vector.load %arg4[%c0_4, %c0_5] : memref<32x8xf32, #tpu.memory_space<vmem>>, vector<32x8xf32>
    %cst_6 = arith.constant dense<0.000000e+00> : vector<32x31xf32>
    %7 = tpu.matmul %6, %3, %cst_6 {dimension_numbers = #tpu.dot_dimension_numbers<[1], [0], [0], [1], [0, 0, 1, 1], [], []>} : vector<32x8xf32>, vector<8x31xf32>, vector<32x31xf32> -> vector<32x31xf32>
    %8 = arith.addf %5, %7 : vector<32x31xf32>
    %c0_7 = arith.constant 0 : index
    %c0_8 = arith.constant 0 : index
    %9 = vector.load %arg5[%c0_7, %c0_8] : memref<32x1xf32, #tpu.memory_space<vmem>>, vector<32x1xf32>
    %10 = vector.broadcast %9 : vector<32x1xf32> to vector<32x31xf32>
    %11 = arith.addf %8, %10 : vector<32x31xf32>
    %cst_9 = arith.constant 0.000000e+00 : f32
    %12 = vector.broadcast %cst_9 : f32 to vector<32x31xf32>
    %13 = arith.maximumf %11, %12 : vector<32x31xf32>
    %c0_10 = arith.constant 0 : index
    %c0_11 = arith.constant 0 : index
    %c0_12 = arith.constant 0 : index
    %14 = vector.load %arg6[%c0_10, %c0_11, %c0_12] : memref<1x32x31xf32, #tpu.memory_space<vmem>>, vector<1x32x31xf32>
    %15 = vector.shape_cast %14 : vector<1x32x31xf32> to vector<32x31xf32>
    %16 = vector.shape_cast %13 : vector<32x31xf32> to vector<1x32x31xf32>
    tpu.vector_store %arg6[%c0_10, %c0_11, %c0_12], %16 {strides = array<i32>} : memref<1x32x31xf32, #tpu.memory_space<vmem>>, vector<1x32x31xf32>,
    return
  }
  func.func @transform_0(%arg0: i32, %arg1: i32) -> (i32, i32, i32) {
    %c0_i32 = arith.constant 0 : i32
    %c0_i32_0 = arith.constant 0 : i32
    return %arg0, %c0_i32, %arg1 : i32, i32, i32
  }
  func.func @transform_1(%arg0: i32, %arg1: i32) -> (i32, i32) {
    %c0_i32 = arith.constant 0 : i32
    %c0_i32_0 = arith.constant 0 : i32
    %c0_i32_1 = arith.constant 0 : i32
    return %c0_i32, %c0_i32_0 : i32, i32
  }
  func.func @transform_2(%arg0: i32, %arg1: i32) -> (i32, i32) {
    %c0_i32 = arith.constant 0 : i32
    %c0_i32_0 = arith.constant 0 : i32
    %c0_i32_1 = arith.constant 0 : i32
    return %c0_i32, %c0_i32_0 : i32, i32
  }
  func.func @transform_3(%arg0: i32, %arg1: i32) -> (i32, i32) {
    %c0_i32 = arith.constant 0 : i32
    %c0_i32_0 = arith.constant 0 : i32
    %c0_i32_1 = arith.constant 0 : i32
    return %c0_i32, %c0_i32_0 : i32, i32
  }
  func.func @transform_4(%arg0: i32, %arg1: i32) -> (i32, i32, i32) {
    %c0_i32 = arith.constant 0 : i32
    %c0_i32_0 = arith.constant 0 : i32
    return %arg0, %c0_i32, %arg1 : i32, i32, i32
  }
}

</mosaic_0001>

<llo_original>
// kernel: tpu_custom_call.1
$region0: #{tpu_custom_call.1}
  #allocation0 [shape = 'u32[]', space=smem, size = 0x4, offset = 0x4, fixed_abs, tag = 'smem constant byte address 0x4 - core index']
  #allocation1 [shape = 'u32[144,128]{1,0:T(1,128)}', space=vmem, size = 0x12000, scoped, tag = 'internal scratch']
  %s0 = inlined_call_operand.vmem [shape: f32[2,8,128], index: 0, kind: input, shape index: {}]
  %s1 = inlined_call_operand.vmem [shape: f32[32,8], index: 1, kind: input, shape index: {}]
  %s2 = inlined_call_operand.vmem [shape: f32[32,8], index: 2, kind: input, shape index: {}]
  %s3 = inlined_call_operand.vmem [shape: f32[32,1], index: 3, kind: input, shape index: {}]
  %s4 = inlined_call_operand.vmem [shape: f32[2,32,31], index: 4, kind: output, shape index: {}]
  %s5 = sld [smem:[#allocation0]]
  $region49: #{tpu_custom_call.1} parent=0
    _
  %s7 = ssub.s32 1, %s5
  %s8 = scalar_select 0, %s7, %s5
  loop: start=0, step=1, limit=4
  $region2: #{tpu_custom_call.1} parent=0 // loop_pre_header
    _
  $region3: #{tpu_custom_call.1} parent=0 // loop_header
    %s10 = sphi 0, %s14
    %p11 = scmp.ge.s32.totalorder %s10, 4
    %s17 = sphi 0, %s29
    %s18 = sphi 0, %s25
    %s19 = sphi 0, %s17
    %s20 = sphi 0, %s18
    %s21 = sphi 0, %s19
    %s22 = sphi 0, %s20
    %s34 = sphi 0, %s36
    %s37 = sphi 0, %s34
    %s38 = sphi 0, %s37
    %s54 = sphi 0, %s38
    %s58 = sphi 0, %s58
    %s60 = sphi 0, %s58
    %s61 = sphi 0, %s60
    %s75 = sphi 0, %s61
    %s79 = sphi 0, %s79
    %s81 = sphi 0, %s79
    %s82 = sphi 0, %s81
    %s96 = sphi 0, %s82
    %s100 = sphi 0, %s100
    %s102 = sphi 0, %s100
    %s103 = sphi 0, %s102
    %s117 = sphi 0, %s103
    %s125 = sphi 0, %s127
    %s128 = sphi 0, %s125
    %s129 = sphi 0, %s128
    %s145 = sphi 0, %s129
  $region4: #{tpu_custom_call.1} parent=0 // loop_header_branch
    %13 = sbr.rel (%p11) target = $region8
  $region5: #{tpu_custom_call.1} parent=0 // loop_body
    %s15 = ssub.s32 %s10, 1
    %s16 = ssub.s32 %s10, 2
    %s23 = sadd.s32 1, %s18
    %p24 = scmp.ge.s32.totalorder %s23, 1
    %s25 = scalar_select %p24, 0, %s23
    %s26 = sadd.s32 1, %s17
    %s27 = scalar_select %p24, %s26, %s17
    %p28 = scmp.ge.s32.totalorder %s27, 2
    %s29 = scalar_select %p28, 0, %s27
    %s30 = ssub.s32 %s17, %s29
    %s31 = ssub.s32 %s18, %s25
    %s32 = sor.u32 %s30, %s31
    %p33 = scmp.eq.s32.totalorder %s32, 0
    %s35 = sadd.s32 %s34, 1
    %s36 = scalar_select %p33, %s34, %s35
    %p39 = pneg %p33
    %p40 = scmp.eq.s32.totalorder %s10, 1
    %p41 = por %p39, %p40
    %p42 = scmp.ne.s32.totalorder %s34, %s37
    %p43 = scmp.eq.s32.totalorder %s10, 0
    %p44 = por %p42, %p43
    %p45 = scmp.ne.s32.totalorder %s34, %s37
    %p46 = scmp.eq.s32.totalorder %s15, 1
    %p47 = por %p45, %p46
    %p48 = scmp.ne.s32.totalorder %s37, %s38
    %p49 = scmp.eq.s32.totalorder %s15, 0
    %p50 = por %p48, %p49
    %p51 = scmp.ne.s32.totalorder %s37, %s38
    %p52 = scmp.eq.s32.totalorder %s16, 1
    %p53 = por %p51, %p52
    %p55 = scmp.ne.s32.totalorder %s38, %s54
    %p56 = scmp.eq.s32.totalorder %s16, 0
    %p57 = por %p55, %p56
    %s59 = sadd.s32 %s58, 1
    %p62 = scmp.eq.s32.totalorder %s10, 1
    %p63 = scmp.ne.s32.totalorder %s58, %s60
    %p64 = scmp.eq.s32.totalorder %s10, 0
    %p65 = por %p63, %p64
    %p66 = scmp.ne.s32.totalorder %s58, %s60
    %p67 = scmp.eq.s32.totalorder %s15, 1
    %p68 = por %p66, %p67
    %p69 = scmp.ne.s32.totalorder %s60, %s61
    %p70 = scmp.eq.s32.totalorder %s15, 0
    %p71 = por %p69, %p70
    %p72 = scmp.ne.s32.totalorder %s60, %s61
    %p73 = scmp.eq.s32.totalorder %s16, 1
    %p74 = por %p72, %p73
    %p76 = scmp.ne.s32.totalorder %s61, %s75
    %p77 = scmp.eq.s32.totalorder %s16, 0
    %p78 = por %p76, %p77
    %s80 = sadd.s32 %s79, 1
    %p83 = scmp.eq.s32.totalorder %s10, 1
    %p84 = scmp.ne.s32.totalorder %s79, %s81
    %p85 = scmp.eq.s32.totalorder %s10, 0
    %p86 = por %p84, %p85
    %p87 = scmp.ne.s32.totalorder %s79, %s81
    %p88 = scmp.eq.s32.totalorder %s15, 1
    %p89 = por %p87, %p88
    %p90 = scmp.ne.s32.totalorder %s81, %s82
    %p91 = scmp.eq.s32.totalorder %s15, 0
    %p92 = por %p90, %p91
    %p93 = scmp.ne.s32.totalorder %s81, %s82
    %p94 = scmp.eq.s32.totalorder %s16, 1
    %p95 = por %p93, %p94
    %p97 = scmp.ne.s32.totalorder %s82, %s96
    %p98 = scmp.eq.s32.totalorder %s16, 0
    %p99 = por %p97, %p98
    %s101 = sadd.s32 %s100, 1
    %p104 = scmp.eq.s32.totalorder %s10, 1
    %p105 = scmp.ne.s32.totalorder %s100, %s102
    %p106 = scmp.eq.s32.totalorder %s10, 0
    %p107 = por %p105, %p106
    %p108 = scmp.ne.s32.totalorder %s100, %s102
    %p109 = scmp.eq.s32.totalorder %s15, 1
    %p110 = por %p108, %p109
    %p111 = scmp.ne.s32.totalorder %s102, %s103
    %p112 = scmp.eq.s32.totalorder %s15, 0
    %p113 = por %p111, %p112
    %p114 = scmp.ne.s32.totalorder %s102, %s103
    %p115 = scmp.eq.s32.totalorder %s16, 1
    %p116 = por %p114, %p115
    %p118 = scmp.ne.s32.totalorder %s103, %s117
    %p119 = scmp.eq.s32.totalorder %s16, 0
    %p120 = por %p118, %p119
    %s121 = ssub.s32 %s17, %s29
    %s122 = ssub.s32 %s18, %s25
    %s123 = sor.u32 %s121, %s122
    %p124 = scmp.eq.s32.totalorder %s123, 0
    %s126 = sadd.s32 %s125, 1
    %s127 = scalar_select %p124, %s125, %s126
    %p130 = pneg %p124
    %p131 = scmp.eq.s32.totalorder %s10, 1
    %p132 = por %p130, %p131
    %p133 = scmp.ne.s32.totalorder %s125, %s128
    %p134 = scmp.eq.s32.totalorder %s10, 0
    %p135 = por %p133, %p134
    %p136 = scmp.ne.s32.totalorder %s125, %s128
    %p137 = scmp.eq.s32.totalorder %s15, 1
    %p138 = por %p136, %p137
    %p139 = scmp.ne.s32.totalorder %s128, %s129
    %p140 = scmp.eq.s32.totalorder %s15, 0
    %p141 = por %p139, %p140
    %p142 = scmp.ne.s32.totalorder %s128, %s129
    %p143 = scmp.eq.s32.totalorder %s16, 1
    %p144 = por %p142, %p143
    %p146 = scmp.ne.s32.totalorder %s129, %s145
    %p147 = scmp.eq.s32.totalorder %s16, 0
    %p148 = por %p146, %p147
    %p149 = scmp.le.s32.totalorder 1, %s10
    %p150 = scmp.lt.s32.totalorder %s10, 3
    %p151 = pnand %p149, %p150
    %p152 = pneg %p151
    // Predicated region
    $region9: #{tpu_custom_call.1} parent=5 // pred_check
      _
    $region10: #{tpu_custom_call.1} parent=5 // pred_check_branch
      %154 = sbr.rel (%p151) target = $region12
    $region11: #{tpu_custom_call.1} parent=5 // pred_region
      %s155 = ssub.s32 %s10, 1
      // Predicated region
      $region13: #{tpu_custom_call.1} parent=11 // pred_check
        %p156 = pneg %p71
      $region14: #{tpu_custom_call.1} parent=11 // pred_check_branch
        %158 = sbr.rel (%p156) target = $region16
      $region15: #{tpu_custom_call.1} parent=11 // pred_region
        _
      $region16: #{tpu_custom_call.1} parent=11 // pred_fallthru
        _
      // Predicated region
      $region17: #{tpu_custom_call.1} parent=11 // pred_check
        %p159 = pneg %p92
      $region18: #{tpu_custom_call.1} parent=11 // pred_check_branch
        %161 = sbr.rel (%p159) target = $region20
      $region19: #{tpu_custom_call.1} parent=11 // pred_region
        _
      $region20: #{tpu_custom_call.1} parent=11 // pred_fallthru
        _
      // Predicated region
      $region21: #{tpu_custom_call.1} parent=11 // pred_check
        %p162 = pneg %p113
      $region22: #{tpu_custom_call.1} parent=11 // pred_check_branch
        %164 = sbr.rel (%p162) target = $region24
      $region23: #{tpu_custom_call.1} parent=11 // pred_region
        _
      $region24: #{tpu_custom_call.1} parent=11 // pred_fallthru
        _
    $region12: #{tpu_custom_call.1} parent=5 // pred_fallthru
      _
    %p165 = scmp.lt.s32.totalorder %s10, 2
    // Predicated region
    $region25: #{tpu_custom_call.1} parent=5 // pred_check
      %p166 = pneg %p165
    $region26: #{tpu_custom_call.1} parent=5 // pred_check_branch
      %168 = sbr.rel (%p166) target = $region28
    $region27: #{tpu_custom_call.1} parent=5 // pred_region
      // Predicated region
      $region29: #{tpu_custom_call.1} parent=27 // pred_check
        %p169 = pneg %p44
      $region30: #{tpu_custom_call.1} parent=27 // pred_check_branch
        %171 = sbr.rel (%p169) target = $region32
      $region31: #{tpu_custom_call.1} parent=27 // pred_region
        %p172 = scmp.lt.s32.totalorder %s17, 1
        %s173 = scalar_select %p172, %s17, 1
        %p174 = scmp.lt.s32.totalorder %s18, 0
        %s175 = scalar_select %p174, %s18, 0
        %s176 = sadd.s32 %s175, %s173
        %s177 = smul.addr %s176, 8
        %s178 = scalar_lea.vmem %s0, %s177
      $region32: #{tpu_custom_call.1} parent=27 // pred_fallthru
        _
    $region28: #{tpu_custom_call.1} parent=5 // pred_fallthru
      _
    %p179 = scmp.le.s32.totalorder 1, %s10
    %p180 = scmp.lt.s32.totalorder %s10, 3
    %p181 = pnand %p179, %p180
    %p182 = pneg %p181
    // Predicated region
    $region33: #{tpu_custom_call.1} parent=5 // pred_check
      _
    $region34: #{tpu_custom_call.1} parent=5 // pred_check_branch
      %184 = sbr.rel (%p181) target = $region36
    $region35: #{tpu_custom_call.1} parent=5 // pred_region
      %s185 = ssub.s32 %s10, 1
      %p186 = scmp.lt.s32.totalorder %s19, 1
      %s187 = scalar_select %p186, %s19, 1
      %p188 = scmp.lt.s32.totalorder %s20, 0
      %s189 = scalar_select %p188, %s20, 0
      %s190 = sadd.s32 %s189, %s187
      %s191 = smul.addr %s190, 8
      %s192 = scalar_lea.vmem %s0, %s191
      %p193 = pneg %p50
      %p194 = pneg %p47
      %p195 = pneg %p71
      %p196 = pneg %p68
      %p197 = pneg %p92
      %p198 = pneg %p89
      %p199 = pneg %p113
      %p200 = pneg %p110
      %p201 = pneg %p141
      %p202 = pneg %p138
      %p203 = scmp.lt.s32.totalorder %s19, 1
      %s204 = scalar_select %p203, %s19, 1
      %p205 = scmp.lt.s32.totalorder %s20, 0
      %s206 = scalar_select %p205, %s20, 0
      %s207 = smul.addr %s204, 4
      %s208 = sadd.s32 %s206, %s207
      %s209 = smul.addr %s208, 8
      %s210 = scalar_lea.vmem %s4, %s209
      %p211 = scmp.lt.s32.totalorder %s19, 1
      %s212 = scalar_select %p211, %s19, 1
      %p213 = scmp.lt.s32.totalorder %s20, 0
      %s214 = scalar_select %p213, %s20, 0
      %s215 = sadd.s32 %s214, %s212
      %s216 = smul.addr %s215, 8
      %s217 = scalar_lea.vmem %s0, %s216
      %p218 = scmp.lt.s32.totalorder %s19, 1
      %s219 = scalar_select %p218, %s19, 1
      %p220 = scmp.lt.s32.totalorder %s20, 0
      %s221 = scalar_select %p220, %s20, 0
      %s222 = smul.addr %s219, 4
      %s223 = sadd.s32 %s221, %s222
      %s224 = smul.addr %s223, 8
      %s225 = scalar_lea.vmem %s4, %s224
      %v226 = vld [vmem:[%s217] sm:$0xff]
      %v227 = vld [vmem:[%s1] sm:$0xff]
      %v228 = vld [vmem:[%s1 + $0x8] sm:$0xff]
      %v229 = vld [vmem:[%s1 + $0x10] sm:$0xff]
      %v230 = vld [vmem:[%s1 + $0x18] sm:$0xff]
      %v231 = vld [vmem:[%s2] sm:$0xff]
      %v232 = vld [vmem:[%s2 + $0x8] sm:$0xff]
      %v233 = vld [vmem:[%s2 + $0x10] sm:$0xff]
      %v234 = vld [vmem:[%s2 + $0x18] sm:$0xff]
      %236 = vrot.lane.b32.xlu0 %v226, 127
      %v237 = vpop.permute.xlu0 %236
      %vm239 = vcmask 64512
      %v241 = vsel %vm239, %v231, 0
      %v244 = vsel %vm239, %v232, 0
      %v247 = vsel %vm239, %v233, 0
      %v250 = vsel %vm239, %v234, 0
      %252 = vmatprep.subr.mxu0 0.0
      %253 = vmatpush1.msra.mxu0 %v237
      %254 = vmatprep.subr.mxu0 0.0
      %255 = vmatpush1.msra.mxu0 0.0
      %256 = vmatprep.subr.mxu0 0.0
      %257 = vmatpush1.msra.mxu0 0.0
      %258 = vmatprep.subr.mxu0 0.0
      %259 = vmatpush1.msra.mxu0 0.0
      %260 = vmatprep.subr.mxu0 0.0
      %261 = vmatpush1.msra.mxu0 0.0
      %262 = vmatprep.subr.mxu0 0.0
      %263 = vmatpush1.msra.mxu0 0.0
      %264 = vmatprep.subr.mxu0 0.0
      %265 = vmatpush1.msra.mxu0 0.0
      %266 = vmatprep.subr.mxu0 0.0
      %267 = vmatpush1.msra.mxu0 0.0
      %268 = vmatprep.subr.mxu0 0.0
      %269 = vmatpush1.msra.mxu0 0.0
      %270 = vmatprep.subr.mxu0 0.0
      %271 = vmatpush1.msra.mxu0 0.0
      %272 = vmatprep.subr.mxu0 0.0
      %273 = vmatpush1.msra.mxu0 0.0
      %274 = vmatprep.subr.mxu0 0.0
      %275 = vmatpush1.msra.mxu0 0.0
      %276 = vmatprep.subr.mxu0 0.0
      %277 = vmatpush1.msra.mxu0 0.0
      %278 = vmatprep.subr.mxu0 0.0
      %279 = vmatpush1.msra.mxu0 0.0
      %280 = vmatprep.subr.mxu0 0.0
      %281 = vmatpush1.msra.mxu0 0.0
      %282 = vmatprep.subr.mxu0 0.0
      %283 = vmatpush1.msra.mxu0 0.0
      %284 = vmatprep.subr.mxu0 0.0
      %285 = vmatpush1.msra.mxu0 0.0
      %286 = vmatprep.subr.mxu0 0.0
      %287 = vmatpush1.msra.mxu0 0.0
      %288 = vmatprep.subr.mxu0 0.0
      %289 = vmatpush1.msra.mxu0 0.0
      %290 = vmatprep.subr.mxu0 0.0
      %291 = vmatpush1.msra.mxu0 0.0
      %292 = vmatprep.subr.mxu0 0.0
      %293 = vmatpush1.msra.mxu0 0.0
      %294 = vmatprep.subr.mxu0 0.0
      %295 = vmatpush1.msra.mxu0 0.0
      %296 = vmatprep.subr.mxu0 0.0
      %297 = vmatpush1.msra.mxu0 0.0
      %298 = vmatprep.subr.mxu0 0.0
      %299 = vmatpush1.msra.mxu0 0.0
      %300 = vmatprep.subr.mxu0 0.0
      %301 = vmatpush1.msra.mxu0 0.0
      %302 = vmatprep.subr.mxu0 0.0
      %303 = vmatpush1.msra.mxu0 0.0
      %304 = vmatprep.subr.mxu0 0.0
      %305 = vmatpush1.msra.mxu0 0.0
      %306 = vmatprep.subr.mxu0 0.0
      %307 = vmatpush1.msra.mxu0 0.0
      %308 = vmatprep.subr.mxu0 0.0
      %309 = vmatpush1.msra.mxu0 0.0
      %310 = vmatprep.subr.mxu0 0.0
      %311 = vmatpush1.msra.mxu0 0.0
      %312 = vmatprep.subr.mxu0 0.0
      %313 = vmatpush1.msra.mxu0 0.0
      %314 = vmatprep.subr.mxu0 0.0
      %315 = vmatpush1.msra.mxu0 0.0
      %316 = vmatprep.mubr.f32.mxu0 0.0
      %317 = vmatmul.mubr.f32.gmra.mrb[0].mxu0 %v241
      %v318 = vpop.f32.mrb[0].mxu0
      %v319 = vadd.f32 0.0, %v318
      %v320 = vpop.f32.mrb[0].mxu0
      %321 = vmatprep.mubr.f32.mxu0 0.0
      %322 = vmatmul.mubr.f32.gmra.mrb[0].mxu0 %v244
      %v323 = vpop.f32.mrb[0].mxu0
      %v324 = vadd.f32 0.0, %v323
      %v325 = vpop.f32.mrb[0].mxu0
      %326 = vmatprep.mubr.f32.mxu0 0.0
      %327 = vmatmul.mubr.f32.gmra.mrb[0].mxu0 %v247
      %v328 = vpop.f32.mrb[0].mxu0
      %v329 = vadd.f32 0.0, %v328
      %v330 = vpop.f32.mrb[0].mxu0
      %331 = vmatprep.mubr.f32.mxu0 0.0
      %332 = vmatmul.mubr.f32.gmra.mrb[0].mxu0 %v250
      %v333 = vpop.f32.mrb[0].mxu0
      %v334 = vadd.f32 0.0, %v333
      %v335 = vpop.f32.mrb[0].mxu0
      %336 = vdwg.mxu0
      %v338 = vsel %vm239, %v227, 0
      %v341 = vsel %vm239, %v228, 0
      %v344 = vsel %vm239, %v229, 0
      %v347 = vsel %vm239, %v230, 0
      %349 = vmatprep.subr.mxu0 0.0
      %350 = vmatpush1.msra.mxu0 %v226
      %351 = vmatprep.subr.mxu0 0.0
      %352 = vmatpush1.msra.mxu0 0.0
      %353 = vmatprep.subr.mxu0 0.0
      %354 = vmatpush1.msra.mxu0 0.0
      %355 = vmatprep.subr.mxu0 0.0
      %356 = vmatpush1.msra.mxu0 0.0
      %357 = vmatprep.subr.mxu0 0.0
      %358 = vmatpush1.msra.mxu0 0.0
      %359 = vmatprep.subr.mxu0 0.0
      %360 = vmatpush1.msra.mxu0 0.0
      %361 = vmatprep.subr.mxu0 0.0
      %362 = vmatpush1.msra.mxu0 0.0
      %363 = vmatprep.subr.mxu0 0.0
      %364 = vmatpush1.msra.mxu0 0.0
      %365 = vmatprep.subr.mxu0 0.0
      %366 = vmatpush1.msra.mxu0 0.0
      %367 = vmatprep.subr.mxu0 0.0
      %368 = vmatpush1.msra.mxu0 0.0
      %369 = vmatprep.subr.mxu0 0.0
      %370 = vmatpush1.msra.mxu0 0.0
      %371 = vmatprep.subr.mxu0 0.0
      %372 = vmatpush1.msra.mxu0 0.0
      %373 = vmatprep.subr.mxu0 0.0
      %374 = vmatpush1.msra.mxu0 0.0
      %375 = vmatprep.subr.mxu0 0.0
      %376 = vmatpush1.msra.mxu0 0.0
      %377 = vmatprep.subr.mxu0 0.0
      %378 = vmatpush1.msra.mxu0 0.0
      %379 = vmatprep.subr.mxu0 0.0
      %380 = vmatpush1.msra.mxu0 0.0
      %381 = vmatprep.subr.mxu0 0.0
      %382 = vmatpush1.msra.mxu0 0.0
      %383 = vmatprep.subr.mxu0 0.0
      %384 = vmatpush1.msra.mxu0 0.0
      %385 = vmatprep.subr.mxu0 0.0
      %386 = vmatpush1.msra.mxu0 0.0
      %387 = vmatprep.subr.mxu0 0.0
      %388 = vmatpush1.msra.mxu0 0.0
      %389 = vmatprep.subr.mxu0 0.0
      %390 = vmatpush1.msra.mxu0 0.0
      %391 = vmatprep.subr.mxu0 0.0
      %392 = vmatpush1.msra.mxu0 0.0
      %393 = vmatprep.subr.mxu0 0.0
      %394 = vmatpush1.msra.mxu0 0.0
      %395 = vmatprep.subr.mxu0 0.0
      %396 = vmatpush1.msra.mxu0 0.0
      %397 = vmatprep.subr.mxu0 0.0
      %398 = vmatpush1.msra.mxu0 0.0
      %399 = vmatprep.subr.mxu0 0.0
      %400 = vmatpush1.msra.mxu0 0.0
      %401 = vmatprep.subr.mxu0 0.0
      %402 = vmatpush1.msra.mxu0 0.0
      %403 = vmatprep.subr.mxu0 0.0
      %404 = vmatpush1.msra.mxu0 0.0
      %405 = vmatprep.subr.mxu0 0.0
      %406 = vmatpush1.msra.mxu0 0.0
      %407 = vmatprep.subr.mxu0 0.0
      %408 = vmatpush1.msra.mxu0 0.0
      %409 = vmatprep.subr.mxu0 0.0
      %410 = vmatpush1.msra.mxu0 0.0
      %411 = vmatprep.subr.mxu0 0.0
      %412 = vmatpush1.msra.mxu0 0.0
      %413 = vmatprep.mubr.f32.mxu0 0.0
      %414 = vmatmul.mubr.f32.gmra.mrb[0].mxu0 %v338
      %v415 = vpop.f32.mrb[0].mxu0
      %v416 = vadd.f32 %v319, %v415
      %v417 = vpop.f32.mrb[0].mxu0
      %418 = vmatprep.mubr.f32.mxu0 0.0
      %419 = vmatmul.mubr.f32.gmra.mrb[0].mxu0 %v341
      %v420 = vpop.f32.mrb[0].mxu0
      %v421 = vadd.f32 %v324, %v420
      %v422 = vpop.f32.mrb[0].mxu0
      %423 = vmatprep.mubr.f32.mxu0 0.0
      %424 = vmatmul.mubr.f32.gmra.mrb[0].mxu0 %v344
      %v425 = vpop.f32.mrb[0].mxu0
      %v426 = vadd.f32 %v329, %v425
      %v427 = vpop.f32.mrb[0].mxu0
      %428 = vmatprep.mubr.f32.mxu0 0.0
      %429 = vmatmul.mubr.f32.gmra.mrb[0].mxu0 %v347
      %v430 = vpop.f32.mrb[0].mxu0
      %v431 = vadd.f32 %v334, %v430
      %v432 = vpop.f32.mrb[0].mxu0
      %433 = vdwg.mxu0
      %v434 = vld [vmem:[%s3] sm:$0xff]
      %v435 = vld [vmem:[%s3 + $0x8] sm:$0xff]
      %v436 = vld [vmem:[%s3 + $0x10] sm:$0xff]
      %v437 = vld [vmem:[%s3 + $0x18] sm:$0xff]
      %439 = vset.pattern.permute.xlu0 0
      %440 = vperm.xlu0 %439, %v434
      %v441 = vpop.permute.xlu0 %440
      %444 = vset.pattern.permute.xlu0 0
      %445 = vperm.xlu0 %444, %v435
      %v446 = vpop.permute.xlu0 %445
      %449 = vset.pattern.permute.xlu0 0
      %450 = vperm.xlu0 %449, %v436
      %v451 = vpop.permute.xlu0 %450
      %454 = vset.pattern.permute.xlu0 0
      %455 = vperm.xlu0 %454, %v437
      %v456 = vpop.permute.xlu0 %455
      %v458 = vadd.f32 %v416, %v441
      %v459 = vadd.f32 %v421, %v446
      %v460 = vadd.f32 %v426, %v451
      %v461 = vadd.f32 %v431, %v456
      %v462 = vmax.f32 %v458, 0.0
      %v463 = vmax.f32 %v459, 0.0
      %v464 = vmax.f32 %v460, 0.0
      %v465 = vmax.f32 %v461, 0.0
      %vm466 = vcmask 252928
      %467 = vst.msk [vmem:[%s225] sm:$0xff] %vm466, %v462
      %468 = vst.msk [vmem:[%s225 + $0x8] sm:$0xff] %vm466, %v463
      %469 = vst.msk [vmem:[%s225 + $0x10] sm:$0xff] %vm466, %v464
      %470 = vst.msk [vmem:[%s225 + $0x18] sm:$0xff] %vm466, %v465
      %p471 = scmp.lt.s32.totalorder %s19, 1
      %s472 = scalar_select %p471, %s19, 1
      %p473 = scmp.lt.s32.totalorder %s20, 0
      %s474 = scalar_select %p473, %s20, 0
      %s475 = smul.addr %s472, 4
      %s476 = sadd.s32 %s474, %s475
      %s477 = smul.addr %s476, 8
      %s478 = scalar_lea.vmem %s4, %s477
      // Predicated region
      $region37: #{tpu_custom_call.1} parent=35 // pred_check
        %p479 = pneg %p138
      $region38: #{tpu_custom_call.1} parent=35 // pred_check_branch
        %481 = sbr.rel (%p479) target = $region40
      $region39: #{tpu_custom_call.1} parent=35 // pred_region
        _
      $region40: #{tpu_custom_call.1} parent=35 // pred_fallthru
        _
    $region36: #{tpu_custom_call.1} parent=5 // pred_fallthru
      _
    %p482 = scmp.le.s32.totalorder 2, %s10
    // Predicated region
    $region41: #{tpu_custom_call.1} parent=5 // pred_check
      %p483 = pneg %p482
    $region42: #{tpu_custom_call.1} parent=5 // pred_check_branch
      %485 = sbr.rel (%p483) target = $region44
    $region43: #{tpu_custom_call.1} parent=5 // pred_region
      %s486 = ssub.s32 %s10, 2
      // Predicated region
      $region45: #{tpu_custom_call.1} parent=43 // pred_check
        %p487 = pneg %p144
      $region46: #{tpu_custom_call.1} parent=43 // pred_check_branch
        %489 = sbr.rel (%p487) target = $region48
      $region47: #{tpu_custom_call.1} parent=43 // pred_region
        %p490 = scmp.lt.s32.totalorder %s21, 1
        %s491 = scalar_select %p490, %s21, 1
        %p492 = scmp.lt.s32.totalorder %s22, 0
        %s493 = scalar_select %p492, %s22, 0
        %s494 = smul.addr %s491, 4
        %s495 = sadd.s32 %s493, %s494
        %s496 = smul.addr %s495, 8
        %s497 = scalar_lea.vmem %s4, %s496
      $region48: #{tpu_custom_call.1} parent=43 // pred_fallthru
        _
    $region44: #{tpu_custom_call.1} parent=5 // pred_fallthru
      _
  $region6: #{tpu_custom_call.1} parent=0 // loop_footer
    %s14 = sadd.s32 1, %s10
  $region7: #{tpu_custom_call.1} parent=0 // loop_footer_branch
    %9 = sbr.rel target = $region3
  $region8: #{tpu_custom_call.1} parent=0 // loop_exit
    _

</llo_original>
